<compile_context>
chip_gen: v7x
topology: tpu7x:2x2x1
jax: 0.10.0
libtpu: 0.0.40
codegen_flags: <defaults>
</compile_context>

<pallas_src>
import functools

import jax
import jax.numpy as jnp
from jax import lax
from jax.experimental import pallas as pl
from jax.experimental.pallas import tpu as pltpu

EPS = 1e-5
LANE = 128


def _vmem_capacity_bytes():
    try:
        return int(pltpu.get_tpu_info().vmem_capacity_bytes)
    except Exception:
        return 64 * 1024 * 1024  # conservative (v7x per-core VMEM)


_VMEM_CAP = _vmem_capacity_bytes()
# 96 MiB on v5e/v6e (128 MiB physical), 48 MiB on v7x (64 MiB physical).
_VMEM_LIMIT = int(max(32 * 1024 * 1024, min(_VMEM_CAP * 3 // 4, 96 * 1024 * 1024)))
_TM_CAP = 1024 if _VMEM_CAP > 96 * 1024 * 1024 else 512


def _relu6(x):
    return jnp.clip(x, 0.0, 6.0)


def _round_up(n, m):
    return (n + m - 1) // m * m


def _pick_tile_m(m):
    cands = [t for t in (1024, 512, 256, 128, 64, 32, 16, 8) if t <= _TM_CAP]
    for t in cands:                       # prefer >=2 grid steps (pipelining)
        if m % t == 0 and m // t >= 2:
            return t
    for t in cands:
        if m % t == 0:
            return t
    return m  # TODO(synk): pad rows / mask the last tile when m is not 8-divisible.


def _pick_tile_s(s_len):
    for t in (1024, 512, 256, 128):
        if s_len % t == 0:
            return t
    return s_len  # TODO(synk): mask/pad when the spatial extent is not lane-aligned.


def _pad_last(a, target):
    c = a.shape[-1]
    if c == target:
        return a
    pad = [(0, 0)] * (a.ndim - 1) + [(0, target - c)]
    return jnp.pad(a, pad)


def _pad_2d(w, rows, cols):
    return jnp.pad(w, ((0, rows - w.shape[0]), (0, cols - w.shape[1])))


def _bn_affine(s_part, ss_part, count, gamma, beta):
    # Reduce the per-tile partial sums (tiny arrays) in plain JAX, then fold the
    # training-mode batch statistics into a per-channel scale/shift.
    s = jnp.sum(s_part, axis=tuple(range(s_part.ndim - 1)))
    ss = jnp.sum(ss_part, axis=tuple(range(ss_part.ndim - 1)))
    mean = s / count
    var = jnp.maximum(ss / count - mean * mean, 0.0)
    scale = gamma * lax.rsqrt(var + EPS)
    shift = beta - mean * scale
    return scale, shift


# ---------------------------------------------------------------------------
# Kernel A (expand & pointwise): optional fused BN-apply + ReLU6 of the previous
# stage, 1x1 conv as an MXU matmul (bf16 operands, f32 accumulation) + bias,
# emitting this stage's per-tile BN partial sums. All grid steps independent.
# ---------------------------------------------------------------------------
def _mm_stats_kernel(*refs, apply_affine):
    if apply_affine:
        x_ref, sc_ref, sh_ref, w_ref, b_ref, y_ref, s_ref, ss_ref = refs
    else:
        x_ref, w_ref, b_ref, y_ref, s_ref, ss_ref = refs

    x = x_ref[...]
    if apply_affine:
        x = _relu6(x.astype(jnp.float32) * sc_ref[...] + sh_ref[...])

    y = jnp.dot(x.astype(jnp.bfloat16), w_ref[...],            # bf16 MXU, f32 acc
                preferred_element_type=jnp.float32) + b_ref[...]

    y_ref[...] = y.astype(y_ref.dtype)                          # bf16 store
    s_ref[...] = jnp.sum(y, axis=0).reshape(1, 1, -1)           # f32 partial stats
    ss_ref[...] = jnp.sum(y * y, axis=0).reshape(1, 1, -1)


def _conv1x1_stats(x2d, w_bf16, b, scale=None, shift=None):
    m, k = x2d.shape
    cout = w_bf16.shape[1]
    tm = _pick_tile_m(m)
    gm = m // tm
    apply_affine = scale is not None
    kern = functools.partial(_mm_stats_kernel, apply_affine=apply_affine)

    inputs = [x2d]
    in_specs = [pl.BlockSpec((tm, k), lambda i: (i, 0))]
    if apply_affine:
        inputs += [scale.reshape(1, k), shift.reshape(1, k)]
        in_specs += [pl.BlockSpec((1, k), lambda i: (0, 0)),
                     pl.BlockSpec((1, k), lambda i: (0, 0))]
    inputs += [w_bf16, b.reshape(1, cout)]
    in_specs += [pl.BlockSpec((k, cout), lambda i: (0, 0)),
                 pl.BlockSpec((1, cout), lambda i: (0, 0))]

    out_shape = (jax.ShapeDtypeStruct((m, cout), jnp.bfloat16),
                 jax.ShapeDtypeStruct((gm, 1, cout), jnp.float32),
                 jax.ShapeDtypeStruct((gm, 1, cout), jnp.float32))
    out_specs = (pl.BlockSpec((tm, cout), lambda i: (i, 0)),
                 pl.BlockSpec((1, 1, cout), lambda i: (i, 0, 0)),
                 pl.BlockSpec((1, 1, cout), lambda i: (i, 0, 0)))

    return pl.pallas_call(
        kern,
        grid=(gm,),
        in_specs=in_specs,
        out_specs=out_specs,
        out_shape=out_shape,
        compiler_params=pltpu.CompilerParams(
            dimension_semantics=("parallel",),
            vmem_limit_bytes=_VMEM_LIMIT),
    )(*inputs)


# ---------------------------------------------------------------------------
# Kernel B (depthwise): fused stage-1 BN-apply + ReLU6 -> in-scratch padding
# (interior store + halo rows/cols) -> depthwise 3x3 + bias, emitting per-(image,
# channel-tile) BN partial sums. Grid = (N, C/128), fully parallel.
# ---------------------------------------------------------------------------
def _dw_stats_kernel(y1_ref, sc_ref, sh_ref, w_ref, b_ref,
                     y2_ref, s_ref, ss_ref, pad_ref, *, stride, reflect):
    h, w, c = y1_ref.shape
    ho, wo, _ = y2_ref.shape

    # Stage-1 BatchNorm apply + ReLU6 fused here (no separate HBM round trip).
    a = _relu6(y1_ref[...].astype(jnp.float32) * sc_ref[...].reshape(1, 1, c)
               + sh_ref[...].reshape(1, 1, c))                    # (H, W, C) f32

    # Padded (H+2, W+2, C) input built in-place in VMEM scratch: interior window
    # store, then only the 4 halo rows/cols (reflect for stride==1, zeros else).
    pad_ref[pl.ds(1, h), pl.ds(1, w), :] = a
    if reflect:
        pad_ref[0, pl.ds(1, w), :] = a[1]
        pad_ref[h + 1, pl.ds(1, w), :] = a[h - 2]
        pad_ref[:, 0, :] = pad_ref[:, 2, :]
        pad_ref[:, w + 1, :] = pad_ref[:, w - 1, :]
    else:
        zr = jnp.zeros((w + 2, c), jnp.float32)
        pad_ref[0, :, :] = zr
        pad_ref[h + 1, :, :] = zr
        zc = jnp.zeros((h + 2, c), jnp.float32)
        pad_ref[:, 0, :] = zc
        pad_ref[:, w + 1, :] = zc

    # 9 taps as Ref-level window loads; for stride=2 the windows are strided so only
    # the kept outputs are ever computed (~4x less VPU work than full-res + subsample).
    w9 = w_ref[...]                                               # (9, C), loaded once
    acc = jnp.zeros((ho, wo, c), jnp.float32)
    for k in range(9):
        dy, dx = divmod(k, 3)
        if stride == 1:
            win = pad_ref[pl.ds(dy, ho), pl.ds(dx, wo), :]
        else:
            win = pad_ref[pl.ds(dy, ho, stride), pl.ds(dx, wo, stride), :]
        acc = acc + win * w9[k].reshape(1, 1, c)
    acc = acc + b_ref[...].reshape(1, 1, c)

    y2_ref[...] = acc.astype(y2_ref.dtype)                        # bf16 store
    s_ref[...] = jnp.sum(acc, axis=(0, 1)).reshape(1, 1, c)       # f32 partial stats
    ss_ref[...] = jnp.sum(acc * acc, axis=(0, 1)).reshape(1, 1, c)


def _depthwise_stats(y1_4d, scale1, shift1, w9c, b, stride):
    # TODO(synk): for very large H/W, add output-row tiling with a 1-row halo on top
    # of the channel tiling to further bound the per-step VMEM footprint.
    n, h, w, c = y1_4d.shape
    ho = (h - 1) // stride + 1
    wo = (w - 1) // stride + 1
    ct = LANE                     # c is padded to a multiple of 128 by the wrapper
    cb = c // ct
    kern = functools.partial(_dw_stats_kernel, stride=stride, reflect=(stride == 1))

    in_specs = [
        pl.BlockSpec((None, h, w, ct), lambda i, j: (i, 0, 0, j)),
        pl.BlockSpec((1, ct), lambda i, j: (0, j)),
        pl.BlockSpec((1, ct), lambda i, j: (0, j)),
        pl.BlockSpec((9, ct), lambda i, j: (0, j)),
        pl.BlockSpec((1, ct), lambda i, j: (0, j)),
    ]
    out_specs = (
        pl.BlockSpec((None, ho, wo, ct), lambda i, j: (i, 0, 0, j)),
        pl.BlockSpec((1, 1, ct), lambda i, j: (i, 0, j)),
        pl.BlockSpec((1, 1, ct), lambda i, j: (i, 0, j)),
    )
    out_shape = (jax.ShapeDtypeStruct((n, ho, wo, c), jnp.bfloat16),
                 jax.ShapeDtypeStruct((n, 1, c), jnp.float32),
                 jax.ShapeDtypeStruct((n, 1, c), jnp.float32))

    return pl.pallas_call(
        kern,
        grid=(n, cb),
        in_specs=in_specs,
        out_specs=out_specs,
        out_shape=out_shape,
        scratch_shapes=[pltpu.VMEM((h + 2, w + 2, ct), jnp.float32)],
        compiler_params=pltpu.CompilerParams(
            dimension_semantics=("parallel", "parallel"),
            vmem_limit_bytes=_VMEM_LIMIT),
    )(y1_4d, scale1.reshape(1, c), shift1.reshape(1, c), w9c, b.reshape(1, c))


# ---------------------------------------------------------------------------
# Kernel C: final BN-apply + ReLU6 (+ fused residual add), emitting NCHW-layout
# (N, Cout, H*W) tiles via an in-kernel transpose (lane dim = spatial, so stores
# stay lane-dense with the true, unpadded channel count). Fully parallel grid.
# ---------------------------------------------------------------------------
def _final_kernel(*refs, cout, add_residual):
    if add_residual:
        y_ref, sc_ref, sh_ref, r_ref, o_ref = refs
    else:
        y_ref, sc_ref, sh_ref, o_ref = refs
    y_t = jnp.transpose(y_ref[...].astype(jnp.float32))          # (Cout_p, ts), XLU
    out = _relu6(y_t[:cout, :] * sc_ref[...] + sh_ref[...])      # (Cout, ts)
    if add_residual:
        out = out + r_ref[...].astype(jnp.float32)               # residual from NCHW x
    o_ref[...] = out.astype(o_ref.dtype)


def _bn_relu6_nchw(y_pre, scale, shift, n, s_len, cout, residual=None):
    m, cout_p = y_pre.shape
    ts = _pick_tile_s(s_len)
    st = s_len // ts
    add_res = residual is not None
    kern = functools.partial(_final_kernel, cout=cout, add_residual=add_res)

    inputs = [y_pre, scale.reshape(cout, 1), shift.reshape(cout, 1)]
    in_specs = [pl.BlockSpec((ts, cout_p), lambda i, j: (i * st + j, 0)),
                pl.BlockSpec((cout, 1), lambda i, j: (0, 0)),
                pl.BlockSpec((cout, 1), lambda i, j: (0, 0))]
    if add_res:
        inputs.append(residual)
        in_specs.append(pl.BlockSpec((None, cout, ts), lambda i, j: (i, 0, j)))

    return pl.pallas_call(
        kern,
        grid=(n, st),
        in_specs=in_specs,
        out_specs=pl.BlockSpec((None, cout, ts), lambda i, j: (i, 0, j)),
        out_shape=jax.ShapeDtypeStruct((n, cout, s_len), jnp.float32),
        compiler_params=pltpu.CompilerParams(
            dimension_semantics=("parallel", "parallel"),
            vmem_limit_bytes=_VMEM_LIMIT),
    )(*inputs)


# ---------------------------------------------------------------------------
# Full MobileNetV2Block forward (layout/padding glue in JAX, hot path in Pallas)
# ---------------------------------------------------------------------------
def mobilenet_v2_block(x_nchw, params, stride):
    n, cin, h, w = x_nchw.shape
    w1, b1, g1, bt1 = params["expand"]       # w1: (Cin, Cmid)
    wd, bd, gd, btd = params["depthwise"]    # wd: (9, Cmid)
    w3, b3, g3, bt3 = params["pointwise"]    # w3: (Cmid, Cout)
    cmid, cout = w1.shape[1], w3.shape[1]
    cmid_p, cout_p = _round_up(cmid, LANE), _round_up(cout, LANE)

    # NHWC with the TRUE (unpadded) input channel count; bf16 storage (MXU dtype).
    x_nhwc = jnp.transpose(x_nchw, (0, 2, 3, 1))
    x2d = x_nhwc.reshape(n * h * w, cin).astype(jnp.bfloat16)

    # Parameters: only the output-channel axes are padded to 128 (lane-dense stores);
    # the contracting dim of the expand conv stays at the true Cin.
    w1p = _pad_2d(w1, cin, cmid_p).astype(jnp.bfloat16)
    w3p = _pad_2d(w3, cmid_p, cout_p).astype(jnp.bfloat16)
    wdp = _pad_2d(wd, 9, cmid_p)
    b1p, g1p, bt1p = (_pad_last(v, cmid_p) for v in (b1, g1, bt1))
    bdp, gdp, btdp = (_pad_last(v, cmid_p) for v in (bd, gd, btd))
    b3p, g3p, bt3p = (_pad_last(v, cout_p) for v in (b3, g3, bt3))

    # stage 1: expand 1x1 conv + bias, per-tile stats for BN1
    m1 = n * h * w
    y1, s1, ss1 = _conv1x1_stats(x2d, w1p, b1p)
    sc1, sh1 = _bn_affine(s1, ss1, m1, g1p, bt1p)

    # stage 2: BN1-apply + ReLU6 + pad + depthwise 3x3 + bias, stats for BN2
    y2, s2, ss2 = _depthwise_stats(y1.reshape(n, h, w, cmid_p), sc1, sh1, wdp, bdp, stride)
    ho, wo = y2.shape[1], y2.shape[2]
    m2 = n * ho * wo
    sc2, sh2 = _bn_affine(s2, ss2, m2, gdp, btdp)

    # stage 3: BN2-apply + ReLU6 fused into the pointwise matmul load, stats for BN3
    y3, s3, ss3 = _conv1x1_stats(y2.reshape(m2, cmid_p), w3p, b3p, scale=sc2, shift=sh2)
    sc3, sh3 = _bn_affine(s3, ss3, m2, g3p, bt3p)

    # stage 4: BN3-apply + ReLU6 (+ residual) writing NCHW tiles directly
    use_res = (stride == 1) and (cin == cout)
    res_ncs = x_nchw.reshape(n, cin, h * w) if use_res else None
    out_ncs = _bn_relu6_nchw(y3, sc3[:cout], sh3[:cout], n, ho * wo, cout,
                             residual=res_ncs)
    return out_ncs.reshape(n, cout, ho, wo)

    # TODO(synk): BatchNorm running-stat (momentum) updates are stateful and not
    # modeled; normalization follows PyTorch training-mode batch statistics.


# ---------------------------------------------------------------------------
# Pure-JAX reference mirroring the PyTorch module (NCHW, lax.conv). To keep the
# comparison tight it mirrors the two intentional approximations of the kernel
# pipeline: bf16 MXU operands for the 1x1 convs and bf16 HBM storage of the
# pre-BN activations (statistics stay f32).
# ---------------------------------------------------------------------------
def _ref_cbg(x, w_oihw, b, g, bt, pad, stride, groups, pad_mode, mxu_bf16=False):
    if mxu_bf16:
        x = x.astype(jnp.bfloat16).astype(jnp.float32)
        w_oihw = w_oihw.astype(jnp.bfloat16).astype(jnp.float32)
    if pad > 0:
        x = jnp.pad(x, ((0, 0), (0, 0), (pad, pad), (pad, pad)), mode=pad_mode)
    y = lax.conv_general_dilated(
        x, w_oihw, (stride, stride), "VALID",
        dimension_numbers=("NCHW", "OIHW", "NCHW"),
        feature_group_count=groups, precision=lax.Precision.HIGHEST)
    y = y + b[None, :, None, None]
    mean = jnp.mean(y, axis=(0, 2, 3), keepdims=True)
    var = jnp.mean((y - mean) ** 2, axis=(0, 2, 3), keepdims=True)
    y = y.astype(jnp.bfloat16).astype(jnp.float32)   # mirror bf16 activation storage
    yn = (y - mean) / jnp.sqrt(var + EPS)
    return jnp.clip(g[None, :, None, None] * yn + bt[None, :, None, None], 0.0, 6.0)


def mobilenet_v2_block_ref(x, torch_params, stride):
    cin = x.shape[1]
    (w1, b1, g1, bt1), (wd, bd, gd, btd), (w3, b3, g3, bt3) = torch_params
    y = _ref_cbg(x, w1[:, :, None, None], b1, g1, bt1, 0, 1, 1, "reflect", mxu_bf16=True)
    y = _ref_cbg(y, wd[:, None, :, :], bd, gd, btd, 1, stride, wd.shape[0],
                 "reflect" if stride == 1 else "constant")
    y = _ref_cbg(y, w3[:, :, None, None], b3, g3, bt3, 0, 1, 1, "reflect", mxu_bf16=True)
    if stride == 1 and cin == w3.shape[0]:
        y = y + x
    return y


if __name__ == "__main__":
    # Small config: batch=2, in=4, H=W=16, expansion=4, out=4 (residual used at stride=1)
    N, Cin, H, W = 2, 4, 16, 16
    expansion, Cout = 4, 4
    Cmid = Cin * expansion

    key = jax.random.PRNGKey(0)
    ks = jax.random.split(key, 13)
    x = jax.random.normal(ks[0], (N, Cin, H, W), jnp.float32)

    # Deterministic parameters in PyTorch layout.
    w1_t = 0.2 * jax.random.normal(ks[1], (Cmid, Cin), jnp.float32)   # Conv (O, I)
    b1 = 0.1 * jax.random.normal(ks[2], (Cmid,), jnp.float32)
    g1 = 1.0 + 0.1 * jax.random.normal(ks[3], (Cmid,), jnp.float32)
    bt1 = 0.1 * jax.random.normal(ks[4], (Cmid,), jnp.float32)

    wd_t = 0.2 * jax.random.normal(ks[5], (Cmid, 3, 3), jnp.float32)  # Conv (O=C, 1, 3, 3) squeezed
    bd = 0.1 * jax.random.normal(ks[6], (Cmid,), jnp.float32)
    gd = 1.0 + 0.1 * jax.random.normal(ks[7], (Cmid,), jnp.float32)
    btd = 0.1 * jax.random.normal(ks[8], (Cmid,), jnp.float32)

    w3_t = 0.2 * jax.random.normal(ks[9], (Cout, Cmid), jnp.float32)  # Conv (O, I)
    b3 = 0.1 * jax.random.normal(ks[10], (Cout,), jnp.float32)
    g3 = 1.0 + 0.1 * jax.random.normal(ks[11], (Cout,), jnp.float32)
    bt3 = 0.1 * jax.random.normal(ks[12], (Cout,), jnp.float32)

    # Kernel-layout params: 1x1 weights transposed to (Cin, Cout); depthwise to (9, C).
    params = {
        "expand": (w1_t.T, b1, g1, bt1),
        "depthwise": (jnp.transpose(wd_t, (1, 2, 0)).reshape(9, Cmid), bd, gd, btd),
        "pointwise": (w3_t.T, b3, g3, bt3),
    }
    torch_params = ((w1_t, b1, g1, bt1), (wd_t, bd, gd, btd), (w3_t, b3, g3, bt3))

    for stride in (1, 2):
        out = jax.block_until_ready(mobilenet_v2_block(x, params, stride))
        ref = jax.block_until_ready(mobilenet_v2_block_ref(x, torch_params, stride))
        assert out.shape == ref.shape, (stride, out.shape, ref.shape)
        err = jnp.abs(out - ref)
        max_err = float(jnp.max(err))
        mean_err = float(jnp.mean(err))
        # Tolerance covers f32 accumulation-order differences and rare bf16
        # rounding-boundary flips of the (mirrored) MXU/storage casts.
        assert max_err < 2e-2 and mean_err < 2e-3, (stride, max_err, mean_err)

    print("KERNEL_OK")
</pallas_src>

<mosaic_0001>
module attributes {stable_mosaic.version = 11 : i64} {
  func.func @_mm_stats_kernel(%arg0: i32, %arg1: memref<256x4xbf16, #tpu.memory_space<vmem>>, %arg2: memref<4x128xbf16, #tpu.memory_space<vmem>>, %arg3: memref<1x128xf32, #tpu.memory_space<vmem>>, %arg4: memref<256x128xbf16, #tpu.memory_space<vmem>>, %arg5: memref<1x1x128xf32, #tpu.memory_space<vmem>>, %arg6: memref<1x1x128xf32, #tpu.memory_space<vmem>>) attributes {dimension_semantics = [#tpu.dimension_semantics<parallel>], iteration_bounds = array<i64: 2>, scalar_prefetch = 0 : i64, scratch_operands = 0 : i64, tpu.core_type = #tpu.core_type<tc>, window_params = [{transform_indices = @transform_0, window_bounds = array<i64: 256, 4>}, {pipeline_mode = #tpu.pipeline_mode<synchronous>, transform_indices = @transform_1, window_bounds = array<i64: 4, 128>}, {pipeline_mode = #tpu.pipeline_mode<synchronous>, transform_indices = @transform_2, window_bounds = array<i64: 1, 128>}, {transform_indices = @transform_3, window_bounds = array<i64: 256, 128>}, {transform_indices = @transform_4, window_bounds = array<i64: 1, 1, 128>}, {transform_indices = @transform_5, window_bounds = array<i64: 1, 1, 128>}]} {
    %c0 = arith.constant 0 : index
    %c0_0 = arith.constant 0 : index
    %0 = vector.load %arg1[%c0, %c0_0] : memref<256x4xbf16, #tpu.memory_space<vmem>>, vector<256x4xbf16>
    %c0_1 = arith.constant 0 : index
    %c0_2 = arith.constant 0 : index
    %1 = vector.load %arg2[%c0_1, %c0_2] : memref<4x128xbf16, #tpu.memory_space<vmem>>, vector<4x128xbf16>
    %cst = arith.constant dense<0.000000e+00> : vector<256x128xf32>
    %2 = tpu.matmul %0, %1, %cst {dimension_numbers = #tpu.dot_dimension_numbers<[1], [0], [0], [1], [0, 0, 1, 1], [], []>} : vector<256x4xbf16>, vector<4x128xbf16>, vector<256x128xf32> -> vector<256x128xf32>
    %c0_3 = arith.constant 0 : index
    %c0_4 = arith.constant 0 : index
    %3 = vector.load %arg3[%c0_3, %c0_4] : memref<1x128xf32, #tpu.memory_space<vmem>>, vector<1x128xf32>
    %4 = vector.broadcast %3 : vector<1x128xf32> to vector<256x128xf32>
    %5 = arith.addf %2, %4 : vector<256x128xf32>
    %6 = arith.truncf %5 : vector<256x128xf32> to vector<256x128xbf16>
    %c0_5 = arith.constant 0 : index
    %c0_6 = arith.constant 0 : index
    %7 = vector.load %arg4[%c0_5, %c0_6] : memref<256x128xbf16, #tpu.memory_space<vmem>>, vector<256x128xbf16>
    tpu.vector_store %arg4[%c0_5, %c0_6], %6 {strides = array<i32>} : memref<256x128xbf16, #tpu.memory_space<vmem>>, vector<256x128xbf16>,
    %cst_7 = arith.constant dense<0.000000e+00> : vector<128xf32>
    %8 = vector.multi_reduction <add>, %5, %cst_7 [0] : vector<256x128xf32> to vector<128xf32>
    %9 = vector.shape_cast %8 : vector<128xf32> to vector<1x1x128xf32>
    %c0_8 = arith.constant 0 : index
    %c0_9 = arith.constant 0 : index
    %c0_10 = arith.constant 0 : index
    %10 = vector.load %arg5[%c0_8, %c0_9, %c0_10] : memref<1x1x128xf32, #tpu.memory_space<vmem>>, vector<1x1x128xf32>
    tpu.vector_store %arg5[%c0_8, %c0_9, %c0_10], %9 {strides = array<i32>} : memref<1x1x128xf32, #tpu.memory_space<vmem>>, vector<1x1x128xf32>,
    %11 = arith.mulf %5, %5 : vector<256x128xf32>
    %cst_11 = arith.constant dense<0.000000e+00> : vector<128xf32>
    %12 = vector.multi_reduction <add>, %11, %cst_11 [0] : vector<256x128xf32> to vector<128xf32>
    %13 = vector.shape_cast %12 : vector<128xf32> to vector<1x1x128xf32>
    %c0_12 = arith.constant 0 : index
    %c0_13 = arith.constant 0 : index
    %c0_14 = arith.constant 0 : index
    %14 = vector.load %arg6[%c0_12, %c0_13, %c0_14] : memref<1x1x128xf32, #tpu.memory_space<vmem>>, vector<1x1x128xf32>
    tpu.vector_store %arg6[%c0_12, %c0_13, %c0_14], %13 {strides = array<i32>} : memref<1x1x128xf32, #tpu.memory_space<vmem>>, vector<1x1x128xf32>,
    return
  }
  func.func @transform_0(%arg0: i32) -> (i32, i32) {
    %c0_i32 = arith.constant 0 : i32
    %c0_i32_0 = arith.constant 0 : i32
    return %arg0, %c0_i32 : i32, i32
  }
  func.func @transform_1(%arg0: i32) -> (i32, i32) {
    %c0_i32 = arith.constant 0 : i32
    %c0_i32_0 = arith.constant 0 : i32
    %c0_i32_1 = arith.constant 0 : i32
    return %c0_i32, %c0_i32_0 : i32, i32
  }
  func.func @transform_2(%arg0: i32) -> (i32, i32) {
    %c0_i32 = arith.constant 0 : i32
    %c0_i32_0 = arith.constant 0 : i32
    %c0_i32_1 = arith.constant 0 : i32
    return %c0_i32, %c0_i32_0 : i32, i32
  }
  func.func @transform_3(%arg0: i32) -> (i32, i32) {
    %c0_i32 = arith.constant 0 : i32
    %c0_i32_0 = arith.constant 0 : i32
    return %arg0, %c0_i32 : i32, i32
  }
  func.func @transform_4(%arg0: i32) -> (i32, i32, i32) {
    %c0_i32 = arith.constant 0 : i32
    %c0_i32_0 = arith.constant 0 : i32
    %c0_i32_1 = arith.constant 0 : i32
    return %arg0, %c0_i32, %c0_i32_0 : i32, i32, i32
  }
  func.func @transform_5(%arg0: i32) -> (i32, i32, i32) {
    %c0_i32 = arith.constant 0 : i32
    %c0_i32_0 = arith.constant 0 : i32
    %c0_i32_1 = arith.constant 0 : i32
    return %arg0, %c0_i32, %c0_i32_0 : i32, i32, i32
  }
}

</mosaic_0001>

<llo_original>
// kernel: tpu_custom_call.1
$region0: #{tpu_custom_call.1}
  #allocation0 [shape = 'u32[]', space=smem, size = 0x4, offset = 0x4, fixed_abs, tag = 'smem constant byte address 0x4 - core index']
  #allocation1 [shape = 'u32[144,128]{1,0:T(1,128)}', space=vmem, size = 0x12000, scoped, tag = 'internal scratch']
  %s0 = inlined_call_operand.vmem [shape: bf16[512,4], index: 0, kind: input, shape index: {}]
  %s1 = inlined_call_operand.vmem [shape: bf16[4,128], index: 1, kind: input, shape index: {}]
  %s2 = inlined_call_operand.vmem [shape: f32[1,128], index: 2, kind: input, shape index: {}]
  %s3 = inlined_call_operand.hbm [shape: bf16[512,128], index: 3, kind: output, shape index: {0}]
  %s4 = inlined_call_operand.hbm [shape: f32[2,1,128], index: 4, kind: output, shape index: {1}]
  %s5 = inlined_call_operand.hbm [shape: f32[2,1,128], index: 5, kind: output, shape index: {2}]
  %6 = xla_tuple %s3, %s4, %s5
  %s7 = sld [smem:[#allocation0]]
  $region61: #{tpu_custom_call.1} parent=0
    _
  %s9 = ssub.s32 1, %s7
  %s10 = scalar_select 0, %s9, %s7
  $region1: #{tpu_custom_call.1} parent=0
    #allocation2 [shape = 'u8[131072]{0}', space=vmem, size = 0x20000, scoped, tag = 'output window, operand 0']
    #allocation3 [shape = 's32[2]{0}', space=sflag, size = 0x8, scoped, tag = 'scoped memory for tpu_custom_call.1']
    #allocation4 [shape = 'u8[1024]{0}', space=vmem, size = 0x400, scoped, tag = 'output window, operand 1']
    #allocation5 [shape = 's32[2]{0}', space=sflag, size = 0x8, scoped, tag = 'scoped memory for tpu_custom_call.1']
    #allocation6 [shape = 'u8[1024]{0}', space=vmem, size = 0x400, scoped, tag = 'output window, operand 2']
    %11 = vsyncpa [#allocation3], 0
    %s12 = scalar_lea.sflag [#allocation3], 1
    %13 = vsyncpa %s12, 0
    %14 = vsyncpa [#allocation5], 0
    %s15 = scalar_lea.sflag [#allocation5], 1
    %16 = vsyncpa %s15, 0
    loop: start=0, step=1, limit=4
    $region2: #{tpu_custom_call.1} parent=1 // loop_pre_header
      _
    $region3: #{tpu_custom_call.1} parent=1 // loop_header
      %s18 = sphi 0, %s22
      %p19 = scmp.ge.s32.totalorder %s18, 4
      %s28 = sphi 0, %s30
      %s31 = sphi 0, %s28
      %s32 = sphi 0, %s31
      %s48 = sphi 0, %s32
      %s52 = sphi 0, %s52
      %s54 = sphi 0, %s52
      %s55 = sphi 0, %s54
      %s69 = sphi 0, %s55
      %s73 = sphi 0, %s73
      %s75 = sphi 0, %s73
      %s76 = sphi 0, %s75
      %s90 = sphi 0, %s76
      %s96 = sphi 0, %s98
      %s99 = sphi 0, %s96
      %s100 = sphi 0, %s99
      %s116 = sphi 0, %s100
      %s122 = sphi 0, %s124
      %s125 = sphi 0, %s122
      %s126 = sphi 0, %s125
      %s142 = sphi 0, %s126
      %s148 = sphi 0, %s150
      %s151 = sphi 0, %s148
      %s152 = sphi 0, %s151
      %s168 = sphi 0, %s152
    $region4: #{tpu_custom_call.1} parent=1 // loop_header_branch
      %21 = sbr.rel (%p19) target = $region8
    $region5: #{tpu_custom_call.1} parent=1 // loop_body
      %s23 = ssub.s32 %s18, 1
      %s24 = ssub.s32 %s18, 2
      %s25 = sadd.s32 %s18, 1
      %s26 = ssub.s32 %s18, %s25
      %p27 = scmp.eq.s32.totalorder %s26, 0
      %s29 = sadd.s32 %s28, 1
      %s30 = scalar_select %p27, %s28, %s29
      %p33 = pneg %p27
      %p34 = scmp.eq.s32.totalorder %s18, 1
      %p35 = por %p33, %p34
      %p36 = scmp.ne.s32.totalorder %s28, %s31
      %p37 = scmp.eq.s32.totalorder %s18, 0
      %p38 = por %p36, %p37
      %p39 = scmp.ne.s32.totalorder %s28, %s31
      %p40 = scmp.eq.s32.totalorder %s23, 1
      %p41 = por %p39, %p40
      %p42 = scmp.ne.s32.totalorder %s31, %s32
      %p43 = scmp.eq.s32.totalorder %s23, 0
      %p44 = por %p42, %p43
      %p45 = scmp.ne.s32.totalorder %s31, %s32
      %p46 = scmp.eq.s32.totalorder %s24, 1
      %p47 = por %p45, %p46
      %p49 = scmp.ne.s32.totalorder %s32, %s48
      %p50 = scmp.eq.s32.totalorder %s24, 0
      %p51 = por %p49, %p50
      %s53 = sadd.s32 %s52, 1
      %p56 = scmp.eq.s32.totalorder %s18, 1
      %p57 = scmp.ne.s32.totalorder %s52, %s54
      %p58 = scmp.eq.s32.totalorder %s18, 0
      %p59 = por %p57, %p58
      %p60 = scmp.ne.s32.totalorder %s52, %s54
      %p61 = scmp.eq.s32.totalorder %s23, 1
      %p62 = por %p60, %p61
      %p63 = scmp.ne.s32.totalorder %s54, %s55
      %p64 = scmp.eq.s32.totalorder %s23, 0
      %p65 = por %p63, %p64
      %p66 = scmp.ne.s32.totalorder %s54, %s55
      %p67 = scmp.eq.s32.totalorder %s24, 1
      %p68 = por %p66, %p67
      %p70 = scmp.ne.s32.totalorder %s55, %s69
      %p71 = scmp.eq.s32.totalorder %s24, 0
      %p72 = por %p70, %p71
      %s74 = sadd.s32 %s73, 1
      %p77 = scmp.eq.s32.totalorder %s18, 1
      %p78 = scmp.ne.s32.totalorder %s73, %s75
      %p79 = scmp.eq.s32.totalorder %s18, 0
      %p80 = por %p78, %p79
      %p81 = scmp.ne.s32.totalorder %s73, %s75
      %p82 = scmp.eq.s32.totalorder %s23, 1
      %p83 = por %p81, %p82
      %p84 = scmp.ne.s32.totalorder %s75, %s76
      %p85 = scmp.eq.s32.totalorder %s23, 0
      %p86 = por %p84, %p85
      %p87 = scmp.ne.s32.totalorder %s75, %s76
      %p88 = scmp.eq.s32.totalorder %s24, 1
      %p89 = por %p87, %p88
      %p91 = scmp.ne.s32.totalorder %s76, %s90
      %p92 = scmp.eq.s32.totalorder %s24, 0
      %p93 = por %p91, %p92
      %s94 = ssub.s32 %s18, %s25
      %p95 = scmp.eq.s32.totalorder %s94, 0
      %s97 = sadd.s32 %s96, 1
      %s98 = scalar_select %p95, %s96, %s97
      %p101 = pneg %p95
      %p102 = scmp.eq.s32.totalorder %s18, 1
      %p103 = por %p101, %p102
      %p104 = scmp.ne.s32.totalorder %s96, %s99
      %p105 = scmp.eq.s32.totalorder %s18, 0
      %p106 = por %p104, %p105
      %p107 = scmp.ne.s32.totalorder %s96, %s99
      %p108 = scmp.eq.s32.totalorder %s23, 1
      %p109 = por %p107, %p108
      %p110 = scmp.ne.s32.totalorder %s99, %s100
      %p111 = scmp.eq.s32.totalorder %s23, 0
      %p112 = por %p110, %p111
      %p113 = scmp.ne.s32.totalorder %s99, %s100
      %p114 = scmp.eq.s32.totalorder %s24, 1
      %p115 = por %p113, %p114
      %p117 = scmp.ne.s32.totalorder %s100, %s116
      %p118 = scmp.eq.s32.totalorder %s24, 0
      %p119 = por %p117, %p118
      %s120 = ssub.s32 %s18, %s25
      %p121 = scmp.eq.s32.totalorder %s120, 0
      %s123 = sadd.s32 %s122, 1
      %s124 = scalar_select %p121, %s122, %s123
      %p127 = pneg %p121
      %p128 = scmp.eq.s32.totalorder %s18, 1
      %p129 = por %p127, %p128
      %p130 = scmp.ne.s32.totalorder %s122, %s125
      %p131 = scmp.eq.s32.totalorder %s18, 0
      %p132 = por %p130, %p131
      %p133 = scmp.ne.s32.totalorder %s122, %s125
      %p134 = scmp.eq.s32.totalorder %s23, 1
      %p135 = por %p133, %p134
      %p136 = scmp.ne.s32.totalorder %s125, %s126
      %p137 = scmp.eq.s32.totalorder %s23, 0
      %p138 = por %p136, %p137
      %p139 = scmp.ne.s32.totalorder %s125, %s126
      %p140 = scmp.eq.s32.totalorder %s24, 1
      %p141 = por %p139, %p140
      %p143 = scmp.ne.s32.totalorder %s126, %s142
      %p144 = scmp.eq.s32.totalorder %s24, 0
      %p145 = por %p143, %p144
      %s146 = ssub.s32 %s18, %s25
      %p147 = scmp.eq.s32.totalorder %s146, 0
      %s149 = sadd.s32 %s148, 1
      %s150 = scalar_select %p147, %s148, %s149
      %p153 = pneg %p147
      %p154 = scmp.eq.s32.totalorder %s18, 1
      %p155 = por %p153, %p154
      %p156 = scmp.ne.s32.totalorder %s148, %s151
      %p157 = scmp.eq.s32.totalorder %s18, 0
      %p158 = por %p156, %p157
      %p159 = scmp.ne.s32.totalorder %s148, %s151
      %p160 = scmp.eq.s32.totalorder %s23, 1
      %p161 = por %p159, %p160
      %p162 = scmp.ne.s32.totalorder %s151, %s152
      %p163 = scmp.eq.s32.totalorder %s23, 0
      %p164 = por %p162, %p163
      %p165 = scmp.ne.s32.totalorder %s151, %s152
      %p166 = scmp.eq.s32.totalorder %s24, 1
      %p167 = por %p165, %p166
      %p169 = scmp.ne.s32.totalorder %s152, %s168
      %p170 = scmp.eq.s32.totalorder %s24, 0
      %p171 = por %p169, %p170
      %p172 = scmp.le.s32.totalorder 1, %s18
      %p173 = scmp.lt.s32.totalorder %s18, 3
      %p174 = pnand %p172, %p173
      %p175 = pneg %p174
      // Predicated region
      $region9: #{tpu_custom_call.1} parent=5 // pred_check
        _
      $region10: #{tpu_custom_call.1} parent=5 // pred_check_branch
        %177 = sbr.rel (%p174) target = $region12
      $region11: #{tpu_custom_call.1} parent=5 // pred_region
        %s178 = ssub.s32 %s18, 1
        // Predicated region
        $region13: #{tpu_custom_call.1} parent=11 // pred_check
          %p179 = pneg %p65
        $region14: #{tpu_custom_call.1} parent=11 // pred_check_branch
          %181 = sbr.rel (%p179) target = $region16
        $region15: #{tpu_custom_call.1} parent=11 // pred_region
          _
        $region16: #{tpu_custom_call.1} parent=11 // pred_fallthru
          _
        // Predicated region
        $region17: #{tpu_custom_call.1} parent=11 // pred_check
          %p182 = pneg %p86
        $region18: #{tpu_custom_call.1} parent=11 // pred_check_branch
          %184 = sbr.rel (%p182) target = $region20
        $region19: #{tpu_custom_call.1} parent=11 // pred_region
          _
        $region20: #{tpu_custom_call.1} parent=11 // pred_fallthru
          _
      $region12: #{tpu_custom_call.1} parent=5 // pred_fallthru
        _
      %p185 = scmp.lt.s32.totalorder %s18, 2
      // Predicated region
      $region21: #{tpu_custom_call.1} parent=5 // pred_check
        %p186 = pneg %p185
      $region22: #{tpu_custom_call.1} parent=5 // pred_check_branch
        %188 = sbr.rel (%p186) target = $region24
      $region23: #{tpu_custom_call.1} parent=5 // pred_region
        // Predicated region
        $region25: #{tpu_custom_call.1} parent=23 // pred_check
          %p189 = pneg %p38
        $region26: #{tpu_custom_call.1} parent=23 // pred_check_branch
          %191 = sbr.rel (%p189) target = $region28
        $region27: #{tpu_custom_call.1} parent=23 // pred_region
          %s192 = smul.u32 32, %s18
          %p193 = scmp.lt.s32.totalorder %s192, 63
          %s194 = scalar_select %p193, %s192, 63
          %s195 = smul.addr %s194, 4
          %s196 = scalar_lea.vmem %s0, %s195
          %s197 = smul.u32 32, %s18
        $region28: #{tpu_custom_call.1} parent=23 // pred_fallthru
          _
      $region24: #{tpu_custom_call.1} parent=5 // pred_fallthru
        _
      %p198 = scmp.le.s32.totalorder 1, %s18
      %p199 = scmp.lt.s32.totalorder %s18, 3
      %p200 = pnand %p198, %p199
      %p201 = pneg %p200
      // Predicated region
      $region29: #{tpu_custom_call.1} parent=5 // pred_check
        _
      $region30: #{tpu_custom_call.1} parent=5 // pred_check_branch
        %203 = sbr.rel (%p200) target = $region32
      $region31: #{tpu_custom_call.1} parent=5 // pred_region
        %s204 = ssub.s32 %s18, 1
        %s205 = smul.u32 32, %s23
        %p206 = scmp.lt.s32.totalorder %s205, 63
        %s207 = scalar_select %p206, %s205, 63
        %s208 = smul.addr %s207, 4
        %s209 = scalar_lea.vmem %s0, %s208
        %p210 = pneg %p44
        %p211 = pneg %p41
        %p212 = pneg %p65
        %p213 = pneg %p62
        %p214 = pneg %p86
        %p215 = pneg %p83
        %p216 = pneg %p112
        %p217 = pneg %p109
        %s218 = sand.u32 %s99, 1
        %s219 = scalar_lea.sflag [#allocation3], %s218
        %s220 = sand.u32 %s99, 1
        %s221 = smul.addr %s220, 128
        %s222 = scalar_lea.vmem [#allocation2], %s221
        %p223 = pneg %p138
        %p224 = pneg %p135
        %s225 = sand.u32 %s23, 1
        %s226 = scalar_lea.sflag [#allocation5], %s225
        %s227 = sand.u32 %s125, 1
        %s228 = scalar_lea.vmem [#allocation4], %s227
        %p229 = pneg %p164
        %p230 = pneg %p161
        %s231 = sand.u32 %s23, 1
        %s232 = scalar_lea.sflag [#allocation5], %s231
        %s233 = sand.u32 %s151, 1
        %s234 = scalar_lea.vmem [#allocation6], %s233
        %s235 = smul.u32 32, %s23
        %p236 = scmp.lt.s32.totalorder %s235, 63
        %s237 = scalar_select %p236, %s235, 63
        %s238 = smul.addr %s237, 4
        %s239 = scalar_lea.vmem %s0, %s238
        %s240 = smul.u32 32, %s23
        %s241 = smul.u32 32, %s23
        %v243 = vld [vmem:[%s239] sm:$0xf]
        %v244 = vld [vmem:[%s239 + $0x4] sm:$0xf]
        %v245 = vld [vmem:[%s239 + $0x8] sm:$0xf]
        %v246 = vld [vmem:[%s239 + $0xc] sm:$0xf]
        %v247 = vld [vmem:[%s239 + $0x10] sm:$0xf]
        %v248 = vld [vmem:[%s239 + $0x14] sm:$0xf]
        %v249 = vld [vmem:[%s239 + $0x18] sm:$0xf]
        %v250 = vld [vmem:[%s239 + $0x1c] sm:$0xf]
        %v251 = vld [vmem:[%s239 + $0x20] sm:$0xf]
        %v252 = vld [vmem:[%s239 + $0x24] sm:$0xf]
        %v253 = vld [vmem:[%s239 + $0x28] sm:$0xf]
        %v254 = vld [vmem:[%s239 + $0x2c] sm:$0xf]
        %v255 = vld [vmem:[%s239 + $0x30] sm:$0xf]
        %v256 = vld [vmem:[%s239 + $0x34] sm:$0xf]
        %v257 = vld [vmem:[%s239 + $0x38] sm:$0xf]
        %v258 = vld [vmem:[%s239 + $0x3c] sm:$0xf]
        %v259 = vld [vmem:[%s239 + $0x40] sm:$0xf]
        %v260 = vld [vmem:[%s239 + $0x44] sm:$0xf]
        %v261 = vld [vmem:[%s239 + $0x48] sm:$0xf]
        %v262 = vld [vmem:[%s239 + $0x4c] sm:$0xf]
        %v263 = vld [vmem:[%s239 + $0x50] sm:$0xf]
        %v264 = vld [vmem:[%s239 + $0x54] sm:$0xf]
        %v265 = vld [vmem:[%s239 + $0x58] sm:$0xf]
        %v266 = vld [vmem:[%s239 + $0x5c] sm:$0xf]
        %v267 = vld [vmem:[%s239 + $0x60] sm:$0xf]
        %v268 = vld [vmem:[%s239 + $0x64] sm:$0xf]
        %v269 = vld [vmem:[%s239 + $0x68] sm:$0xf]
        %v270 = vld [vmem:[%s239 + $0x6c] sm:$0xf]
        %v271 = vld [vmem:[%s239 + $0x70] sm:$0xf]
        %v272 = vld [vmem:[%s239 + $0x74] sm:$0xf]
        %v273 = vld [vmem:[%s239 + $0x78] sm:$0xf]
        %v274 = vld [vmem:[%s239 + $0x7c] sm:$0xf]
        %v275 = vld [vmem:[%s1] sm:$0x3]
        %v276 = vld [vmem:[%s2] sm:$0x1]
        %v278 = vlaneseq
        %v279 = vshrl.u32 %v278, 7
        %v280 = vsub.s32 0, %v279
        %v281 = vrot.slane %v276, %v280
        %v315 = vunpack.c.l.b16 %v243
        %v316 = vunpack.c.l.b16 %v244
        %v317 = vunpack.c.l.b16 %v245
        %v318 = vunpack.c.l.b16 %v246
        %v319 = vunpack.c.l.b16 %v247
        %v320 = vunpack.c.l.b16 %v248
        %v321 = vunpack.c.l.b16 %v249
        %v322 = vunpack.c.l.b16 %v250
        %v323 = vunpack.c.l.b16 %v251
        %v324 = vunpack.c.l.b16 %v252
        %v325 = vunpack.c.l.b16 %v253
        %v326 = vunpack.c.l.b16 %v254
        %v327 = vunpack.c.l.b16 %v255
        %v328 = vunpack.c.l.b16 %v256
        %v329 = vunpack.c.l.b16 %v257
        %v330 = vunpack.c.l.b16 %v258
        %v331 = vunpack.c.l.b16 %v259
        %v332 = vunpack.c.l.b16 %v260
        %v333 = vunpack.c.l.b16 %v261
        %v334 = vunpack.c.l.b16 %v262
        %v335 = vunpack.c.l.b16 %v263
        %v336 = vunpack.c.l.b16 %v264
        %v337 = vunpack.c.l.b16 %v265
        %v338 = vunpack.c.l.b16 %v266
        %v339 = vunpack.c.l.b16 %v267
        %v340 = vunpack.c.l.b16 %v268
        %v341 = vunpack.c.l.b16 %v269
        %v342 = vunpack.c.l.b16 %v270
        %v343 = vunpack.c.l.b16 %v271
        %v344 = vunpack.c.l.b16 %v272
        %v345 = vunpack.c.l.b16 %v273
        %v346 = vunpack.c.l.b16 %v274
        %v347 = vpack.c.b16 %v316, %v315
        %v348 = vpack.c.b16 %v318, %v317
        %v349 = vpack.c.b16 %v320, %v319
        %v350 = vpack.c.b16 %v322, %v321
        %v351 = vpack.c.b16 %v324, %v323
        %v352 = vpack.c.b16 %v326, %v325
        %v353 = vpack.c.b16 %v328, %v327
        %v354 = vpack.c.b16 %v330, %v329
        %v355 = vpack.c.b16 %v332, %v331
        %v356 = vpack.c.b16 %v334, %v333
        %v357 = vpack.c.b16 %v336, %v335
        %v358 = vpack.c.b16 %v338, %v337
        %v359 = vpack.c.b16 %v340, %v339
        %v360 = vpack.c.b16 %v342, %v341
        %v361 = vpack.c.b16 %v344, %v343
        %v362 = vpack.c.b16 %v346, %v345
        %vm363 = vcmask 31744
        %v365 = vsel %vm363, %v347, 0
        %v368 = vsel %vm363, %v348, 0
        %v371 = vsel %vm363, %v349, 0
        %v374 = vsel %vm363, %v350, 0
        %v377 = vsel %vm363, %v351, 0
        %v380 = vsel %vm363, %v352, 0
        %v383 = vsel %vm363, %v353, 0
        %v386 = vsel %vm363, %v354, 0
        %v389 = vsel %vm363, %v355, 0
        %v392 = vsel %vm363, %v356, 0
        %v395 = vsel %vm363, %v357, 0
        %v398 = vsel %vm363, %v358, 0
        %v401 = vsel %vm363, %v359, 0
        %v404 = vsel %vm363, %v360, 0
        %v407 = vsel %vm363, %v361, 0
        %v410 = vsel %vm363, %v362, 0
        %vm412 = vcmask 1041408
        %v414 = vsel %vm412, %v275, 0
        %416 = vmatprep.subr.bf16.mxu0 0
        %417 = vmatpush1.bf16.msra.mxu0 %v414
        %418 = vmatprep.subr.bf16.mxu0 0
        %419 = vmatpush1.bf16.msra.mxu0 0
        %420 = vmatprep.subr.bf16.mxu0 0
        %421 = vmatpush1.bf16.msra.mxu0 0
        %422 = vmatprep.subr.bf16.mxu0 0
        %423 = vmatpush1.bf16.msra.mxu0 0
        %424 = vmatprep.subr.bf16.mxu0 0
        %425 = vmatpush1.bf16.msra.mxu0 0
        %426 = vmatprep.subr.bf16.mxu0 0
        %427 = vmatpush1.bf16.msra.mxu0 0
        %428 = vmatprep.subr.bf16.mxu0 0
        %429 = vmatpush1.bf16.msra.mxu0 0
        %430 = vmatprep.subr.bf16.mxu0 0
        %431 = vmatpush1.bf16.msra.mxu0 0
        %432 = vmatprep.subr.bf16.mxu0 0
        %433 = vmatpush1.bf16.msra.mxu0 0
        %434 = vmatprep.subr.bf16.mxu0 0
        %435 = vmatpush1.bf16.msra.mxu0 0
        %436 = vmatprep.subr.bf16.mxu0 0
        %437 = vmatpush1.bf16.msra.mxu0 0
        %438 = vmatprep.subr.bf16.mxu0 0
        %439 = vmatpush1.bf16.msra.mxu0 0
        %440 = vmatprep.subr.bf16.mxu0 0
        %441 = vmatpush1.bf16.msra.mxu0 0
        %442 = vmatprep.subr.bf16.mxu0 0
        %443 = vmatpush1.bf16.msra.mxu0 0
        %444 = vmatprep.subr.bf16.mxu0 0
        %445 = vmatpush1.bf16.msra.mxu0 0
        %446 = vmatprep.subr.bf16.mxu0 0
        %447 = vmatpush1.bf16.msra.mxu0 0
        %448 = vmatprep.mubr.bf16.mxu0 0
        %449 = vmatmul.mubr.bf16.gmra.mrb[0].mxu0 %v365
        %v450 = vpop.f32.mrb[0].mxu0
        %v451 = vadd.f32 %v281, %v450
        %v452 = vpop.f32.mrb[0].mxu0
        %v453 = vpop.f32.mrb[0].mxu0
        %v454 = vadd.f32 %v281, %v453
        %v455 = vpop.f32.mrb[0].mxu0
        %456 = vmatprep.mubr.bf16.mxu0 0
        %457 = vmatmul.mubr.bf16.gmra.mrb[0].mxu0 %v368
        %v458 = vpop.f32.mrb[0].mxu0
        %v459 = vadd.f32 %v281, %v458
        %v460 = vpop.f32.mrb[0].mxu0
        %v461 = vpop.f32.mrb[0].mxu0
        %v462 = vadd.f32 %v281, %v461
        %v463 = vpop.f32.mrb[0].mxu0
        %464 = vmatprep.mubr.bf16.mxu0 0
        %465 = vmatmul.mubr.bf16.gmra.mrb[0].mxu0 %v371
        %v466 = vpop.f32.mrb[0].mxu0
        %v467 = vadd.f32 %v281, %v466
        %v468 = vpop.f32.mrb[0].mxu0
        %v469 = vpop.f32.mrb[0].mxu0
        %v470 = vadd.f32 %v281, %v469
        %v471 = vpop.f32.mrb[0].mxu0
        %472 = vmatprep.mubr.bf16.mxu0 0
        %473 = vmatmul.mubr.bf16.gmra.mrb[0].mxu0 %v374
        %v474 = vpop.f32.mrb[0].mxu0
        %v475 = vadd.f32 %v281, %v474
        %v476 = vpop.f32.mrb[0].mxu0
        %v477 = vpop.f32.mrb[0].mxu0
        %v478 = vadd.f32 %v281, %v477
        %v479 = vpop.f32.mrb[0].mxu0
        %480 = vmatprep.mubr.bf16.mxu0 0
        %481 = vmatmul.mubr.bf16.gmra.mrb[0].mxu0 %v377
        %v482 = vpop.f32.mrb[0].mxu0
        %v483 = vadd.f32 %v281, %v482
        %v484 = vpop.f32.mrb[0].mxu0
        %v485 = vpop.f32.mrb[0].mxu0
        %v486 = vadd.f32 %v281, %v485
        %v487 = vpop.f32.mrb[0].mxu0
        %488 = vmatprep.mubr.bf16.mxu0 0
        %489 = vmatmul.mubr.bf16.gmra.mrb[0].mxu0 %v380
        %v490 = vpop.f32.mrb[0].mxu0
        %v491 = vadd.f32 %v281, %v490
        %v492 = vpop.f32.mrb[0].mxu0
        %v493 = vpop.f32.mrb[0].mxu0
        %v494 = vadd.f32 %v281, %v493
        %v495 = vpop.f32.mrb[0].mxu0
        %496 = vmatprep.mubr.bf16.mxu0 0
        %497 = vmatmul.mubr.bf16.gmra.mrb[0].mxu0 %v383
        %v498 = vpop.f32.mrb[0].mxu0
        %v499 = vadd.f32 %v281, %v498
        %v500 = vpop.f32.mrb[0].mxu0
        %v501 = vpop.f32.mrb[0].mxu0
        %v502 = vadd.f32 %v281, %v501
        %v503 = vpop.f32.mrb[0].mxu0
        %504 = vmatprep.mubr.bf16.mxu0 0
        %505 = vmatmul.mubr.bf16.gmra.mrb[0].mxu0 %v386
        %v506 = vpop.f32.mrb[0].mxu0
        %v507 = vadd.f32 %v281, %v506
        %v508 = vpop.f32.mrb[0].mxu0
        %v509 = vpop.f32.mrb[0].mxu0
        %v510 = vadd.f32 %v281, %v509
        %v511 = vpop.f32.mrb[0].mxu0
        %512 = vmatprep.mubr.bf16.mxu0 0
        %513 = vmatmul.mubr.bf16.gmra.mrb[0].mxu0 %v389
        %v514 = vpop.f32.mrb[0].mxu0
        %v515 = vadd.f32 %v281, %v514
        %v516 = vpop.f32.mrb[0].mxu0
        %v517 = vpop.f32.mrb[0].mxu0
        %v518 = vadd.f32 %v281, %v517
        %v519 = vpop.f32.mrb[0].mxu0
        %520 = vmatprep.mubr.bf16.mxu0 0
        %521 = vmatmul.mubr.bf16.gmra.mrb[0].mxu0 %v392
        %v522 = vpop.f32.mrb[0].mxu0
        %v523 = vadd.f32 %v281, %v522
        %v524 = vpop.f32.mrb[0].mxu0
        %v525 = vpop.f32.mrb[0].mxu0
        %v526 = vadd.f32 %v281, %v525
        %v527 = vpop.f32.mrb[0].mxu0
        %528 = vmatprep.mubr.bf16.mxu0 0
        %529 = vmatmul.mubr.bf16.gmra.mrb[0].mxu0 %v395
        %v530 = vpop.f32.mrb[0].mxu0
        %v531 = vadd.f32 %v281, %v530
        %v532 = vpop.f32.mrb[0].mxu0
        %v533 = vpop.f32.mrb[0].mxu0
        %v534 = vadd.f32 %v281, %v533
        %v535 = vpop.f32.mrb[0].mxu0
        %536 = vmatprep.mubr.bf16.mxu0 0
        %537 = vmatmul.mubr.bf16.gmra.mrb[0].mxu0 %v398
        %v538 = vpop.f32.mrb[0].mxu0
        %v539 = vadd.f32 %v281, %v538
        %v540 = vpop.f32.mrb[0].mxu0
        %v541 = vpop.f32.mrb[0].mxu0
        %v542 = vadd.f32 %v281, %v541
        %v543 = vpop.f32.mrb[0].mxu0
        %544 = vmatprep.mubr.bf16.mxu0 0
        %545 = vmatmul.mubr.bf16.gmra.mrb[0].mxu0 %v401
        %v546 = vpop.f32.mrb[0].mxu0
        %v547 = vadd.f32 %v281, %v546
        %v548 = vpop.f32.mrb[0].mxu0
        %v549 = vpop.f32.mrb[0].mxu0
        %v550 = vadd.f32 %v281, %v549
        %v551 = vpop.f32.mrb[0].mxu0
        %552 = vmatprep.mubr.bf16.mxu0 0
        %553 = vmatmul.mubr.bf16.gmra.mrb[0].mxu0 %v404
        %v554 = vpop.f32.mrb[0].mxu0
        %v555 = vadd.f32 %v281, %v554
        %v556 = vpop.f32.mrb[0].mxu0
        %v557 = vpop.f32.mrb[0].mxu0
        %v558 = vadd.f32 %v281, %v557
        %v559 = vpop.f32.mrb[0].mxu0
        %560 = vmatprep.mubr.bf16.mxu0 0
        %561 = vmatmul.mubr.bf16.gmra.mrb[0].mxu0 %v407
        %v562 = vpop.f32.mrb[0].mxu0
        %v563 = vadd.f32 %v281, %v562
        %v564 = vpop.f32.mrb[0].mxu0
        %v565 = vpop.f32.mrb[0].mxu0
        %v566 = vadd.f32 %v281, %v565
        %v567 = vpop.f32.mrb[0].mxu0
        %568 = vmatprep.mubr.bf16.mxu0 0
        %569 = vmatmul.mubr.bf16.gmra.mrb[0].mxu0 %v410
        %v570 = vpop.f32.mrb[0].mxu0
        %v571 = vadd.f32 %v281, %v570
        %v572 = vpop.f32.mrb[0].mxu0
        %v573 = vpop.f32.mrb[0].mxu0
        %v574 = vadd.f32 %v281, %v573
        %v575 = vpop.f32.mrb[0].mxu0
        %576 = vdwg.mxu0
        %v577 = vpack.c.bf16 %v454, %v451
        %v578 = vpack.c.bf16 %v462, %v459
        %v579 = vpack.c.bf16 %v470, %v467
        %v580 = vpack.c.bf16 %v478, %v475
        %v581 = vpack.c.bf16 %v486, %v483
        %v582 = vpack.c.bf16 %v494, %v491
        %v583 = vpack.c.bf16 %v502, %v499
        %v584 = vpack.c.bf16 %v510, %v507
        %v585 = vpack.c.bf16 %v518, %v515
        %v586 = vpack.c.bf16 %v526, %v523
        %v587 = vpack.c.bf16 %v534, %v531
        %v588 = vpack.c.bf16 %v542, %v539
        %v589 = vpack.c.bf16 %v550, %v547
        %v590 = vpack.c.bf16 %v558, %v555
        %v591 = vpack.c.bf16 %v566, %v563
        %v592 = vpack.c.bf16 %v574, %v571
        %v609 = vunpack.c.l.b16 %v577
        %v610 = vunpack.c.h.b16 %v577
        %v611 = vunpack.c.l.b16 %v578
        %v612 = vunpack.c.h.b16 %v578
        %v613 = vunpack.c.l.b16 %v579
        %v614 = vunpack.c.h.b16 %v579
        %v615 = vunpack.c.l.b16 %v580
        %v616 = vunpack.c.h.b16 %v580
        %v617 = vunpack.c.l.b16 %v581
        %v618 = vunpack.c.h.b16 %v581
        %v619 = vunpack.c.l.b16 %v582
        %v620 = vunpack.c.h.b16 %v582
        %v621 = vunpack.c.l.b16 %v583
        %v622 = vunpack.c.h.b16 %v583
        %v623 = vunpack.c.l.b16 %v584
        %v624 = vunpack.c.h.b16 %v584
        %v625 = vunpack.c.l.b16 %v585
        %v626 = vunpack.c.h.b16 %v585
        %v627 = vunpack.c.l.b16 %v586
        %v628 = vunpack.c.h.b16 %v586
        %v629 = vunpack.c.l.b16 %v587
        %v630 = vunpack.c.h.b16 %v587
        %v631 = vunpack.c.l.b16 %v588
        %v632 = vunpack.c.h.b16 %v588
        %v633 = vunpack.c.l.b16 %v589
        %v634 = vunpack.c.h.b16 %v589
        %v635 = vunpack.c.l.b16 %v590
        %v636 = vunpack.c.h.b16 %v590
        %v637 = vunpack.c.l.b16 %v591
        %v638 = vunpack.c.h.b16 %v591
        %v639 = vunpack.c.l.b16 %v592
        %v640 = vunpack.c.h.b16 %v592
        %v641 = vpack.c.b16 %v609, %v609
        %v642 = vpack.c.b16 %v610, %v610
        %v643 = vpack.c.b16 %v611, %v611
        %v644 = vpack.c.b16 %v612, %v612
        %v645 = vpack.c.b16 %v613, %v613
        %v646 = vpack.c.b16 %v614, %v614
        %v647 = vpack.c.b16 %v615, %v615
        %v648 = vpack.c.b16 %v616, %v616
        %v649 = vpack.c.b16 %v617, %v617
        %v650 = vpack.c.b16 %v618, %v618
        %v651 = vpack.c.b16 %v619, %v619
        %v652 = vpack.c.b16 %v620, %v620
        %v653 = vpack.c.b16 %v621, %v621
        %v654 = vpack.c.b16 %v622, %v622
        %v655 = vpack.c.b16 %v623, %v623
        %v656 = vpack.c.b16 %v624, %v624
        %v657 = vpack.c.b16 %v625, %v625
        %v658 = vpack.c.b16 %v626, %v626
        %v659 = vpack.c.b16 %v627, %v627
        %v660 = vpack.c.b16 %v628, %v628
        %v661 = vpack.c.b16 %v629, %v629
        %v662 = vpack.c.b16 %v630, %v630
        %v663 = vpack.c.b16 %v631, %v631
        %v664 = vpack.c.b16 %v632, %v632
        %v665 = vpack.c.b16 %v633, %v633
        %v666 = vpack.c.b16 %v634, %v634
        %v667 = vpack.c.b16 %v635, %v635
        %v668 = vpack.c.b16 %v636, %v636
        %v669 = vpack.c.b16 %v637, %v637
        %v670 = vpack.c.b16 %v638, %v638
        %v671 = vpack.c.b16 %v639, %v639
        %v672 = vpack.c.b16 %v640, %v640
        %705 = vst [vmem:[%s222] sm:$0xf] %v641
        %706 = vst [vmem:[%s222 + $0x4] sm:$0xf] %v642
        %707 = vst [vmem:[%s222 + $0x8] sm:$0xf] %v643
        %708 = vst [vmem:[%s222 + $0xc] sm:$0xf] %v644
        %709 = vst [vmem:[%s222 + $0x10] sm:$0xf] %v645
        %710 = vst [vmem:[%s222 + $0x14] sm:$0xf] %v646
        %711 = vst [vmem:[%s222 + $0x18] sm:$0xf] %v647
        %712 = vst [vmem:[%s222 + $0x1c] sm:$0xf] %v648
        %713 = vst [vmem:[%s222 + $0x20] sm:$0xf] %v649
        %714 = vst [vmem:[%s222 + $0x24] sm:$0xf] %v650
        %715 = vst [vmem:[%s222 + $0x28] sm:$0xf] %v651
        %716 = vst [vmem:[%s222 + $0x2c] sm:$0xf] %v652
        %717 = vst [vmem:[%s222 + $0x30] sm:$0xf] %v653
        %718 = vst [vmem:[%s222 + $0x34] sm:$0xf] %v654
        %719 = vst [vmem:[%s222 + $0x38] sm:$0xf] %v655
        %720 = vst [vmem:[%s222 + $0x3c] sm:$0xf] %v656
        %721 = vst [vmem:[%s222 + $0x40] sm:$0xf] %v657
        %722 = vst [vmem:[%s222 + $0x44] sm:$0xf] %v658
        %723 = vst [vmem:[%s222 + $0x48] sm:$0xf] %v659
        %724 = vst [vmem:[%s222 + $0x4c] sm:$0xf] %v660
        %725 = vst [vmem:[%s222 + $0x50] sm:$0xf] %v661
        %726 = vst [vmem:[%s222 + $0x54] sm:$0xf] %v662
        %727 = vst [vmem:[%s222 + $0x58] sm:$0xf] %v663
        %728 = vst [vmem:[%s222 + $0x5c] sm:$0xf] %v664
        %729 = vst [vmem:[%s222 + $0x60] sm:$0xf] %v665
        %730 = vst [vmem:[%s222 + $0x64] sm:$0xf] %v666
        %731 = vst [vmem:[%s222 + $0x68] sm:$0xf] %v667
        %732 = vst [vmem:[%s222 + $0x6c] sm:$0xf] %v668
        %733 = vst [vmem:[%s222 + $0x70] sm:$0xf] %v669
        %734 = vst [vmem:[%s222 + $0x74] sm:$0xf] %v670
        %735 = vst [vmem:[%s222 + $0x78] sm:$0xf] %v671
        %736 = vst [vmem:[%s222 + $0x7c] sm:$0xf] %v672
        %v737 = vadd.f32 %v451, %v454
        %v738 = vadd.f32 %v737, %v459
        %v739 = vadd.f32 %v738, %v462
        %v740 = vadd.f32 %v739, %v467
        %v741 = vadd.f32 %v740, %v470
        %v742 = vadd.f32 %v741, %v475
        %v743 = vadd.f32 %v742, %v478
        %v744 = vadd.f32 %v743, %v483
        %v745 = vadd.f32 %v744, %v486
        %v746 = vadd.f32 %v745, %v491
        %v747 = vadd.f32 %v746, %v494
        %v748 = vadd.f32 %v747, %v499
        %v749 = vadd.f32 %v748, %v502
        %v750 = vadd.f32 %v749, %v507
        %v751 = vadd.f32 %v750, %v510
        %v752 = vadd.f32 %v751, %v515
        %v753 = vadd.f32 %v752, %v518
        %v754 = vadd.f32 %v753, %v523
        %v755 = vadd.f32 %v754, %v526
        %v756 = vadd.f32 %v755, %v531
        %v757 = vadd.f32 %v756, %v534
        %v758 = vadd.f32 %v757, %v539
        %v759 = vadd.f32 %v758, %v542
        %v760 = vadd.f32 %v759, %v547
        %v761 = vadd.f32 %v760, %v550
        %v762 = vadd.f32 %v761, %v555
        %v763 = vadd.f32 %v762, %v558
        %v764 = vadd.f32 %v763, %v563
        %v765 = vadd.f32 %v764, %v566
        %v766 = vadd.f32 %v765, %v571
        %v767 = vadd.f32 %v766, %v574
        %v768 = vrot.slane %v767, 4
        %v769 = vadd.f32 %v767, %v768
        %v770 = vrot.slane %v769, 2
        %v771 = vadd.f32 %v769, %v770
        %v772 = vrot.slane %v771, 1
        %v773 = vadd.f32 %v771, %v772
        %774 = vst [vmem:[%s228] sm:$0x1] %v773
        %v775 = vmul.f32 %v451, %v451
        %v776 = vmul.f32 %v454, %v454
        %v777 = vmul.f32 %v459, %v459
        %v778 = vmul.f32 %v462, %v462
        %v779 = vmul.f32 %v467, %v467
        %v780 = vmul.f32 %v470, %v470
        %v781 = vmul.f32 %v475, %v475
        %v782 = vmul.f32 %v478, %v478
        %v783 = vmul.f32 %v483, %v483
        %v784 = vmul.f32 %v486, %v486
        %v785 = vmul.f32 %v491, %v491
        %v786 = vmul.f32 %v494, %v494
        %v787 = vmul.f32 %v499, %v499
        %v788 = vmul.f32 %v502, %v502
        %v789 = vmul.f32 %v507, %v507
        %v790 = vmul.f32 %v510, %v510
        %v791 = vmul.f32 %v515, %v515
        %v792 = vmul.f32 %v518, %v518
        %v793 = vmul.f32 %v523, %v523
        %v794 = vmul.f32 %v526, %v526
        %v795 = vmul.f32 %v531, %v531
        %v796 = vmul.f32 %v534, %v534
        %v797 = vmul.f32 %v539, %v539
        %v798 = vmul.f32 %v542, %v542
        %v799 = vmul.f32 %v547, %v547
        %v800 = vmul.f32 %v550, %v550
        %v801 = vmul.f32 %v555, %v555
        %v802 = vmul.f32 %v558, %v558
        %v803 = vmul.f32 %v563, %v563
        %v804 = vmul.f32 %v566, %v566
        %v805 = vmul.f32 %v571, %v571
        %v806 = vmul.f32 %v574, %v574
        %v807 = vadd.f32 %v775, %v776
        %v808 = vadd.f32 %v807, %v777
        %v809 = vadd.f32 %v808, %v778
        %v810 = vadd.f32 %v809, %v779
        %v811 = vadd.f32 %v810, %v780
        %v812 = vadd.f32 %v811, %v781
        %v813 = vadd.f32 %v812, %v782
        %v814 = vadd.f32 %v813, %v783
        %v815 = vadd.f32 %v814, %v784
        %v816 = vadd.f32 %v815, %v785
        %v817 = vadd.f32 %v816, %v786
        %v818 = vadd.f32 %v817, %v787
        %v819 = vadd.f32 %v818, %v788
        %v820 = vadd.f32 %v819, %v789
        %v821 = vadd.f32 %v820, %v790
        %v822 = vadd.f32 %v821, %v791
        %v823 = vadd.f32 %v822, %v792
        %v824 = vadd.f32 %v823, %v793
        %v825 = vadd.f32 %v824, %v794
        %v826 = vadd.f32 %v825, %v795
        %v827 = vadd.f32 %v826, %v796
        %v828 = vadd.f32 %v827, %v797
        %v829 = vadd.f32 %v828, %v798
        %v830 = vadd.f32 %v829, %v799
        %v831 = vadd.f32 %v830, %v800
        %v832 = vadd.f32 %v831, %v801
        %v833 = vadd.f32 %v832, %v802
        %v834 = vadd.f32 %v833, %v803
        %v835 = vadd.f32 %v834, %v804
        %v836 = vadd.f32 %v835, %v805
        %v837 = vadd.f32 %v836, %v806
        %v838 = vrot.slane %v837, 4
        %v839 = vadd.f32 %v837, %v838
        %v840 = vrot.slane %v839, 2
        %v841 = vadd.f32 %v839, %v840
        %v842 = vrot.slane %v841, 1
        %v843 = vadd.f32 %v841, %v842
        %844 = vst [vmem:[%s234] sm:$0x1] %v843
        %s845 = sand.u32 %s99, 1
        %s846 = scalar_lea.sflag [#allocation3], %s845
        %s847 = sand.u32 %s99, 1
        %s848 = smul.addr %s847, 128
        %s849 = scalar_lea.vmem [#allocation2], %s848
        %s850 = sand.u32 %s23, 1
        %s851 = scalar_lea.sflag [#allocation5], %s850
        %s852 = sand.u32 %s125, 1
        %s853 = scalar_lea.vmem [#allocation4], %s852
        %s854 = sand.u32 %s23, 1
        %s855 = scalar_lea.sflag [#allocation5], %s854
        %s856 = sand.u32 %s151, 1
        %s857 = scalar_lea.vmem [#allocation6], %s856
        // Predicated region
        $region33: #{tpu_custom_call.1} parent=31 // pred_check
          %p858 = pneg %p109
        $region34: #{tpu_custom_call.1} parent=31 // pred_check_branch
          %860 = sbr.rel (%p858) target = $region36
        $region35: #{tpu_custom_call.1} parent=31 // pred_region
          %s861 = smul.u32 32, %s23
          %s863 = ssub.s32 2048, 2048
          %864 = vsyncadd %s846, %s863
          %s865 = smul.addr %s861, 64
          %s866 = scalar_lea.hbm %s3, %s865
          %s867 = sshll.u32 %s849, 4
          %s868 = int_to_ptr.vmem [resolvable:$true] %s867
          %873 = dma.vmem_to_hbm [thread:$0]  %s868, 2048, %s866, %s846, 64, 64, 4
        $region36: #{tpu_custom_call.1} parent=31 // pred_fallthru
          _
        // Predicated region
        $region37: #{tpu_custom_call.1} parent=31 // pred_check
          %p874 = pneg %p135
        $region38: #{tpu_custom_call.1} parent=31 // pred_check_branch
          %876 = sbr.rel (%p874) target = $region40
        $region39: #{tpu_custom_call.1} parent=31 // pred_region
          %s878 = ssub.s32 16, 16
          %879 = vsyncadd %s851, %s878
          %s880 = smul.addr %s23, 16
          %s881 = scalar_lea.hbm %s4, %s880
          %s883 = sshll.u32 %s853, 4
          %s884 = int_to_ptr.vmem [resolvable:$true] %s883
          %886 = dma.vmem_to_hbm [thread:$0]  %s884, 16, %s881, %s851
        $region40: #{tpu_custom_call.1} parent=31 // pred_fallthru
          _
        // Predicated region
        $region41: #{tpu_custom_call.1} parent=31 // pred_check
          %p887 = pneg %p161
        $region42: #{tpu_custom_call.1} parent=31 // pred_check_branch
          %889 = sbr.rel (%p887) target = $region44
        $region43: #{tpu_custom_call.1} parent=31 // pred_region
          %s891 = ssub.s32 16, 16
          %892 = vsyncadd %s855, %s891
          %s893 = smul.addr %s23, 16
          %s894 = scalar_lea.hbm %s5, %s893
          %s896 = sshll.u32 %s857, 4
          %s897 = int_to_ptr.vmem [resolvable:$true] %s896
          %899 = dma.vmem_to_hbm [thread:$0]  %s897, 16, %s894, %s855
        $region44: #{tpu_custom_call.1} parent=31 // pred_fallthru
          _
      $region32: #{tpu_custom_call.1} parent=5 // pred_fallthru
        _
      %p900 = scmp.le.s32.totalorder 2, %s18
      // Predicated region
      $region45: #{tpu_custom_call.1} parent=5 // pred_check
        %p901 = pneg %p900
      $region46: #{tpu_custom_call.1} parent=5 // pred_check_branch
        %903 = sbr.rel (%p901) target = $region48
      $region47: #{tpu_custom_call.1} parent=5 // pred_region
        %s904 = ssub.s32 %s18, 2
        // Predicated region
        $region49: #{tpu_custom_call.1} parent=47 // pred_check
          %p905 = pneg %p115
        $region50: #{tpu_custom_call.1} parent=47 // pred_check_branch
          %907 = sbr.rel (%p905) target = $region52
        $region51: #{tpu_custom_call.1} parent=47 // pred_region
          %s908 = sand.u32 %s100, 1
          %s909 = scalar_lea.sflag [#allocation3], %s908
          %s910 = sand.u32 %s100, 1
          %s911 = smul.addr %s910, 128
          %s912 = scalar_lea.vmem [#allocation2], %s911
          %913 = dma.done %s909, 2048
        $region52: #{tpu_custom_call.1} parent=47 // pred_fallthru
          _
        // Predicated region
        $region53: #{tpu_custom_call.1} parent=47 // pred_check
          %p914 = pneg %p141
        $region54: #{tpu_custom_call.1} parent=47 // pred_check_branch
          %916 = sbr.rel (%p914) target = $region56
        $region55: #{tpu_custom_call.1} parent=47 // pred_region
          %s917 = sand.u32 %s24, 1
          %s918 = scalar_lea.sflag [#allocation5], %s917
          %s919 = sand.u32 %s126, 1
          %s920 = scalar_lea.vmem [#allocation4], %s919
          %921 = dma.done %s918, 16
        $region56: #{tpu_custom_call.1} parent=47 // pred_fallthru
          _
        // Predicated region
        $region57: #{tpu_custom_call.1} parent=47 // pred_check
          %p922 = pneg %p167
        $region58: #{tpu_custom_call.1} parent=47 // pred_check_branch
          %924 = sbr.rel (%p922) target = $region60
        $region59: #{tpu_custom_call.1} parent=47 // pred_region
          %s925 = sand.u32 %s24, 1
          %s926 = scalar_lea.sflag [#allocation5], %s925
          %s927 = sand.u32 %s152, 1
          %s928 = scalar_lea.vmem [#allocation6], %s927
          %929 = dma.done %s926, 16
        $region60: #{tpu_custom_call.1} parent=47 // pred_fallthru
          _
      $region48: #{tpu_custom_call.1} parent=5 // pred_fallthru
        _
    $region6: #{tpu_custom_call.1} parent=1 // loop_footer
      %s22 = sadd.s32 1, %s18
    $region7: #{tpu_custom_call.1} parent=1 // loop_footer_branch
      %17 = sbr.rel target = $region3
    $region8: #{tpu_custom_call.1} parent=1 // loop_exit
      _
    %930 = vsyncpa [#allocation3], 1
    %s931 = scalar_lea.sflag [#allocation3], 1
    %932 = vsyncpa %s931, 1
    %933 = vsyncpa [#allocation5], 1
    %s934 = scalar_lea.sflag [#allocation5], 1
    %935 = vsyncpa %s934, 1

</llo_original>
